<compile_context>
chip_gen: v7x
topology: tpu7x:2x2x1
jax: 0.10.0
libtpu: 0.0.40
codegen_flags: <defaults>
</compile_context>

<pallas_src>
import functools

import jax
import jax.numpy as jnp
from jax.experimental import pallas as pl
from jax.experimental.pallas import tpu as pltpu

_LANE = 128
_SUBLANE = 8


def _round_up(x, m):
    return ((x + m - 1) // m) * m


def _mlp_kernel(layer_dims, w_row_offs, x_ref, w_ref, b_ref, out_ref):
    """Fused MLP forward over one batch tile.

    layer_dims : static tuple of (pad_in, pad_out) per layer.
    w_row_offs : static row offset of each layer's weight block inside w_ref.
    x_ref   : (Bt, pad_in0)          f32   batch tile of zero-padded states
    w_ref   : (sum pad_in, Pmax)     bf16  all weights, one VMEM-resident slab
    b_ref   : (8 * n_layers, Pmax)   f32   biases (row 8*i holds layer i's bias)
    out_ref : (Bt, pad_out_last)     f32   lane-dense padded output
    """
    n_layers = len(layer_dims)
    h = x_ref[...]  # f32 activations
    for i, (din, dout) in enumerate(layer_dims):
        r0 = w_row_offs[i]
        w = w_ref[r0:r0 + din, :dout]            # bf16 (din, dout), static slice
        b = b_ref[8 * i:8 * i + 1, :dout]        # f32  (1, dout)
        # bf16-in / f32-accumulate MXU matmul; bias-add stays f32 on the VPU.
        y = jnp.dot(h.astype(jnp.bfloat16), w,
                    preferred_element_type=jnp.float32) + b
        if i < n_layers - 1:
            h = jnp.maximum(y, 0.0)              # ReLU (f32, VPU)
        else:
            out_ref[...] = jnp.tanh(y).astype(out_ref.dtype)  # tanh (f32, EUP)


def pack_params(params):
    """Pack per-layer (W, b) into one bf16 weight slab + one f32 bias slab.

    Every layer dim is padded up to a multiple of 128 (lane width); zero padding
    keeps the math exact (padded columns stay zero through ReLU/matmul).
    """
    layer_dims = []
    for w, _ in params:
        layer_dims.append((_round_up(w.shape[0], _LANE),
                           _round_up(w.shape[1], _LANE)))
    p_max = max(d for _, d in layer_dims)

    w_blocks, b_blocks, row_offs, r = [], [], [], 0
    for (w, b), (din, dout) in zip(params, layer_dims):
        wp = jnp.zeros((din, p_max), jnp.float32)
        wp = wp.at[:w.shape[0], :w.shape[1]].set(w)
        w_blocks.append(wp)
        bp = jnp.zeros((_SUBLANE, p_max), jnp.float32)
        bp = bp.at[0, :b.shape[-1]].set(jnp.reshape(b, (-1,)))
        b_blocks.append(bp)
        row_offs.append(r)
        r += din

    w_slab = jnp.concatenate(w_blocks, axis=0).astype(jnp.bfloat16)
    b_slab = jnp.concatenate(b_blocks, axis=0)  # f32
    return w_slab, b_slab, tuple(layer_dims), tuple(row_offs)


def actor_policy_forward(state, params, *, batch_tile=256):
    """Fused ActorPolicy forward.

    state  : (batch, state_size) float32
    params : list of (W, b) pairs, W (in, out), b (1, out) or (out,);
             last pair is the output layer, preceding pairs are hidden layers.
    """
    B, S = state.shape
    action_size = params[-1][0].shape[1]

    w_slab, b_slab, layer_dims, row_offs = pack_params(params)
    pad_in0 = layer_dims[0][0]
    pad_out = layer_dims[-1][1]

    # Batch tile: multiple of 8 sublanes, capped at batch_tile rows.
    bt = min(batch_tile, _round_up(max(B, _SUBLANE), _SUBLANE))
    b_pad = _round_up(B, bt)
    state_p = jnp.zeros((b_pad, pad_in0), jnp.float32).at[:B, :S].set(state)

    grid = (b_pad // bt,)
    kernel = functools.partial(_mlp_kernel, layer_dims, row_offs)

    flops = 2 * b_pad * sum(din * dout for din, dout in layer_dims)
    bytes_accessed = (state_p.size * 4 + w_slab.size * 2 + b_slab.size * 4
                      + b_pad * pad_out * 4)

    # TODO(synk): if hidden widths grow to >=4096 on v7x (64 MiB VMEM), switch
    # the weight slab to (tk, tn) tiles with a K-accumulator instead of keeping
    # it fully VMEM-resident.
    out_full = pl.pallas_call(
        kernel,
        out_shape=jax.ShapeDtypeStruct((b_pad, pad_out), jnp.float32),
        grid=grid,
        in_specs=[
            pl.BlockSpec((bt, pad_in0), lambda i: (i, 0)),      # batch-tiled state
            pl.BlockSpec(w_slab.shape, lambda i: (0, 0)),       # VMEM-resident weights
            pl.BlockSpec(b_slab.shape, lambda i: (0, 0)),       # VMEM-resident biases
        ],
        out_specs=pl.BlockSpec((bt, pad_out), lambda i: (i, 0)),  # lane-dense output
        compiler_params=pltpu.CompilerParams(
            dimension_semantics=("parallel",)),
        cost_estimate=pl.CostEstimate(
            flops=flops,
            transcendentals=b_pad * pad_out,
            bytes_accessed=bytes_accessed),
    )(state_p, w_slab, b_slab)

    return out_full[:B, :action_size]


def init_params(key, state_size, hidden_layers, action_size):
    """Deterministic parameter init (uniform, PyTorch-Linear-style fan_in bound)."""
    sizes = [state_size] + list(hidden_layers) + [action_size]
    params = []
    for i in range(len(sizes) - 1):
        fan_in, fan_out = sizes[i], sizes[i + 1]
        key, kw, kb = jax.random.split(key, 3)
        bound = 1.0 / float(fan_in) ** 0.5
        w = jax.random.uniform(kw, (fan_in, fan_out), jnp.float32, -bound, bound)
        b = jax.random.uniform(kb, (1, fan_out), jnp.float32, -bound, bound)
        params.append((w, b))
    return params


def reference_forward(state, params):
    """Plain-JAX f32 reference for correctness check."""
    h = state
    for w, b in params[:-1]:
        h = jnp.maximum(h @ w + b, 0.0)
    w, b = params[-1]
    return jnp.tanh(h @ w + b)


if __name__ == "__main__":
    state_size = 8
    hidden_layers = [32, 32]
    action_size = 4
    batch = 2

    key = jax.random.PRNGKey(0)
    key, kx = jax.random.split(key)
    state = jax.random.normal(kx, (batch, state_size), dtype=jnp.float32)

    params = init_params(key, state_size, hidden_layers, action_size)

    out = actor_policy_forward(state, params)
    out = jax.block_until_ready(out)

    ref = reference_forward(state, params)
    assert out.shape == (batch, action_size)
    # bf16 MXU operands with f32 accumulation -> relaxed tolerance vs f32 reference.
    max_err = float(jnp.max(jnp.abs(out - ref)))
    assert jnp.allclose(out, ref, atol=5e-2, rtol=5e-2), f"max abs err {max_err}"

    print("KERNEL_OK")
</pallas_src>

<mosaic_0001>
module attributes {stable_mosaic.version = 11 : i64} {
  func.func @_mlp_kernel(%arg0: i32, %arg1: memref<8x128xf32, #tpu.memory_space<vmem>>, %arg2: memref<384x128xbf16, #tpu.memory_space<vmem>>, %arg3: memref<24x128xf32, #tpu.memory_space<vmem>>, %arg4: memref<8x128xf32, #tpu.memory_space<vmem>>) attributes {dimension_semantics = [#tpu.dimension_semantics<parallel>], iteration_bounds = array<i64: 1>, scalar_prefetch = 0 : i64, scratch_operands = 0 : i64, tpu.core_type = #tpu.core_type<tc>, window_params = [{transform_indices = @transform_0, window_bounds = array<i64: 8, 128>}, {pipeline_mode = #tpu.pipeline_mode<synchronous>, transform_indices = @transform_1, window_bounds = array<i64: 384, 128>}, {pipeline_mode = #tpu.pipeline_mode<synchronous>, transform_indices = @transform_2, window_bounds = array<i64: 24, 128>}, {transform_indices = @transform_3, window_bounds = array<i64: 8, 128>}]} {
    %c0 = arith.constant 0 : index
    %c0_0 = arith.constant 0 : index
    %0 = vector.load %arg1[%c0, %c0_0] : memref<8x128xf32, #tpu.memory_space<vmem>>, vector<8x128xf32>
    %c0_1 = arith.constant 0 : index
    %c0_2 = arith.constant 0 : index
    %1 = vector.load %arg2[%c0_1, %c0_2] : memref<384x128xbf16, #tpu.memory_space<vmem>>, vector<128x128xbf16>
    %c0_3 = arith.constant 0 : index
    %c0_4 = arith.constant 0 : index
    %2 = vector.load %arg3[%c0_3, %c0_4] : memref<24x128xf32, #tpu.memory_space<vmem>>, vector<1x128xf32>
    %3 = arith.truncf %0 : vector<8x128xf32> to vector<8x128xbf16>
    %cst = arith.constant dense<0.000000e+00> : vector<8x128xf32>
    %4 = tpu.matmul %3, %1, %cst {dimension_numbers = #tpu.dot_dimension_numbers<[1], [0], [0], [1], [0, 0, 1, 1], [], []>} : vector<8x128xbf16>, vector<128x128xbf16>, vector<8x128xf32> -> vector<8x128xf32>
    %5 = vector.broadcast %2 : vector<1x128xf32> to vector<8x128xf32>
    %6 = arith.addf %4, %5 : vector<8x128xf32>
    %cst_5 = arith.constant 0.000000e+00 : f32
    %7 = vector.broadcast %cst_5 : f32 to vector<8x128xf32>
    %8 = arith.maximumf %6, %7 : vector<8x128xf32>
    %c128 = arith.constant 128 : index
    %c0_6 = arith.constant 0 : index
    %9 = vector.load %arg2[%c128, %c0_6] : memref<384x128xbf16, #tpu.memory_space<vmem>>, vector<128x128xbf16>
    %c8 = arith.constant 8 : index
    %c0_7 = arith.constant 0 : index
    %10 = vector.load %arg3[%c8, %c0_7] : memref<24x128xf32, #tpu.memory_space<vmem>>, vector<1x128xf32>
    %11 = arith.truncf %8 : vector<8x128xf32> to vector<8x128xbf16>
    %cst_8 = arith.constant dense<0.000000e+00> : vector<8x128xf32>
    %12 = tpu.matmul %11, %9, %cst_8 {dimension_numbers = #tpu.dot_dimension_numbers<[1], [0], [0], [1], [0, 0, 1, 1], [], []>} : vector<8x128xbf16>, vector<128x128xbf16>, vector<8x128xf32> -> vector<8x128xf32>
    %13 = vector.broadcast %10 : vector<1x128xf32> to vector<8x128xf32>
    %14 = arith.addf %12, %13 : vector<8x128xf32>
    %cst_9 = arith.constant 0.000000e+00 : f32
    %15 = vector.broadcast %cst_9 : f32 to vector<8x128xf32>
    %16 = arith.maximumf %14, %15 : vector<8x128xf32>
    %c256 = arith.constant 256 : index
    %c0_10 = arith.constant 0 : index
    %17 = vector.load %arg2[%c256, %c0_10] : memref<384x128xbf16, #tpu.memory_space<vmem>>, vector<128x128xbf16>
    %c16 = arith.constant 16 : index
    %c0_11 = arith.constant 0 : index
    %18 = vector.load %arg3[%c16, %c0_11] : memref<24x128xf32, #tpu.memory_space<vmem>>, vector<1x128xf32>
    %19 = arith.truncf %16 : vector<8x128xf32> to vector<8x128xbf16>
    %cst_12 = arith.constant dense<0.000000e+00> : vector<8x128xf32>
    %20 = tpu.matmul %19, %17, %cst_12 {dimension_numbers = #tpu.dot_dimension_numbers<[1], [0], [0], [1], [0, 0, 1, 1], [], []>} : vector<8x128xbf16>, vector<128x128xbf16>, vector<8x128xf32> -> vector<8x128xf32>
    %21 = vector.broadcast %18 : vector<1x128xf32> to vector<8x128xf32>
    %22 = arith.addf %20, %21 : vector<8x128xf32>
    %23 = math.tanh %22 : vector<8x128xf32>
    %c0_13 = arith.constant 0 : index
    %c0_14 = arith.constant 0 : index
    %24 = vector.load %arg4[%c0_13, %c0_14] : memref<8x128xf32, #tpu.memory_space<vmem>>, vector<8x128xf32>
    tpu.vector_store %arg4[%c0_13, %c0_14], %23 {strides = array<i32>} : memref<8x128xf32, #tpu.memory_space<vmem>>, vector<8x128xf32>,
    return
  }
  func.func @transform_0(%arg0: i32) -> (i32, i32) {
    %c0_i32 = arith.constant 0 : i32
    %c0_i32_0 = arith.constant 0 : i32
    return %arg0, %c0_i32 : i32, i32
  }
  func.func @transform_1(%arg0: i32) -> (i32, i32) {
    %c0_i32 = arith.constant 0 : i32
    %c0_i32_0 = arith.constant 0 : i32
    %c0_i32_1 = arith.constant 0 : i32
    return %c0_i32, %c0_i32_0 : i32, i32
  }
  func.func @transform_2(%arg0: i32) -> (i32, i32) {
    %c0_i32 = arith.constant 0 : i32
    %c0_i32_0 = arith.constant 0 : i32
    %c0_i32_1 = arith.constant 0 : i32
    return %c0_i32, %c0_i32_0 : i32, i32
  }
  func.func @transform_3(%arg0: i32) -> (i32, i32) {
    %c0_i32 = arith.constant 0 : i32
    %c0_i32_0 = arith.constant 0 : i32
    return %arg0, %c0_i32 : i32, i32
  }
}

</mosaic_0001>

<llo_original>
// kernel: tpu_custom_call.1
$region0: #{tpu_custom_call.1}
  #allocation0 [shape = 'u32[]', space=smem, size = 0x4, offset = 0x4, fixed_abs, tag = 'smem constant byte address 0x4 - core index']
  #allocation1 [shape = 'u32[144,128]{1,0:T(1,128)}', space=vmem, size = 0x12000, scoped, tag = 'internal scratch']
  %s0 = inlined_call_operand.hbm [shape: f32[8,128], index: 0, kind: input, shape index: {}]
  %s1 = inlined_call_operand.hbm [shape: bf16[384,128], index: 1, kind: input, shape index: {}]
  %s2 = inlined_call_operand.hbm [shape: f32[24,128], index: 2, kind: input, shape index: {}]
  %s3 = inlined_call_operand.hbm [shape: f32[8,128], index: 3, kind: output, shape index: {}]
  %s4 = sld [smem:[#allocation0]]
  $region34: #{tpu_custom_call.1} parent=0
    _
  %s6 = ssub.s32 1, %s4
  %s7 = scalar_select 0, %s6, %s4
  $region1: #{tpu_custom_call.1} parent=0
    #allocation2 [shape = 'u8[4096]{0}', space=vmem, size = 0x1000, scoped, tag = 'input window, operand 0, single buffered']
    #allocation3 [shape = 's32[1]{0}', space=sflag, size = 0x4, scoped, tag = 'scoped memory for tpu_custom_call.1']
    #allocation4 [shape = 's32[1]{0}', space=sflag, size = 0x4, scoped, tag = 'scoped memory for tpu_custom_call.1']
    #allocation5 [shape = 'u8[98304]{0}', space=vmem, size = 0x18000, scoped, tag = 'input window, operand 1, single buffered']
    #allocation6 [shape = 's32[1]{0}', space=sflag, size = 0x4, scoped, tag = 'scoped memory for tpu_custom_call.1']
    #allocation7 [shape = 'u8[12288]{0}', space=vmem, size = 0x3000, scoped, tag = 'input window, operand 2, single buffered']
    #allocation8 [shape = 'u8[4096]{0}', space=vmem, size = 0x1000, scoped, tag = 'output window, operand 0, single buffered']
    %8 = vsyncpa [#allocation3], 0
    %9 = vsyncpa [#allocation6], 0
    %10 = vsyncpa [#allocation4], 0
    // Predicated region
    $region2: #{tpu_custom_call.1} parent=1 // pred_check
      _
    $region3: #{tpu_custom_call.1} parent=1 // pred_check_branch
      %12 = sbr.rel (0) target = $region5
    $region4: #{tpu_custom_call.1} parent=1 // pred_region
      %s14 = ssub.s32 128, 128
      %15 = vsyncadd [#allocation3], %s14
      %s17 = sshll.u32 [#allocation2], 4
      %s18 = int_to_ptr.vmem [resolvable:$true] %s17
      %20 = dma.hbm_to_vmem [thread:$0]  %s0, 128, %s18, [#allocation3]
    $region5: #{tpu_custom_call.1} parent=1 // pred_fallthru
      _
    // Predicated region
    $region6: #{tpu_custom_call.1} parent=1 // pred_check
      _
    $region7: #{tpu_custom_call.1} parent=1 // pred_check_branch
      %22 = sbr.rel (0) target = $region9
    $region8: #{tpu_custom_call.1} parent=1 // pred_region
      %s24 = ssub.s32 3072, 3072
      %25 = vsyncadd [#allocation6], %s24
      %s26 = sshll.u32 [#allocation5], 4
      %s27 = int_to_ptr.vmem [resolvable:$true] %s26
      %32 = dma.hbm_to_vmem [thread:$0]  %s1, 3072, %s27, [#allocation6], 64, 64, 4
    $region9: #{tpu_custom_call.1} parent=1 // pred_fallthru
      _
    // Predicated region
    $region10: #{tpu_custom_call.1} parent=1 // pred_check
      _
    $region11: #{tpu_custom_call.1} parent=1 // pred_check_branch
      %34 = sbr.rel (0) target = $region13
    $region12: #{tpu_custom_call.1} parent=1 // pred_region
      %s36 = ssub.s32 384, 384
      %37 = vsyncadd [#allocation6], %s36
      %s38 = sshll.u32 [#allocation7], 4
      %s39 = int_to_ptr.vmem [resolvable:$true] %s38
      %44 = dma.hbm_to_vmem [thread:$0]  %s2, 384, %s39, [#allocation6], 128, 128, 8
    $region13: #{tpu_custom_call.1} parent=1 // pred_fallthru
      _
    // Predicated region
    $region14: #{tpu_custom_call.1} parent=1 // pred_check
      _
    $region15: #{tpu_custom_call.1} parent=1 // pred_check_branch
      %46 = sbr.rel (0) target = $region17
    $region16: #{tpu_custom_call.1} parent=1 // pred_region
      %47 = dma.done [#allocation3], 128
    $region17: #{tpu_custom_call.1} parent=1 // pred_fallthru
      _
    // Predicated region
    $region18: #{tpu_custom_call.1} parent=1 // pred_check
      _
    $region19: #{tpu_custom_call.1} parent=1 // pred_check_branch
      %49 = sbr.rel (0) target = $region21
    $region20: #{tpu_custom_call.1} parent=1 // pred_region
      %50 = dma.done [#allocation6], 3072
    $region21: #{tpu_custom_call.1} parent=1 // pred_fallthru
      _
    // Predicated region
    $region22: #{tpu_custom_call.1} parent=1 // pred_check
      _
    $region23: #{tpu_custom_call.1} parent=1 // pred_check_branch
      %52 = sbr.rel (0) target = $region25
    $region24: #{tpu_custom_call.1} parent=1 // pred_region
      %53 = dma.done [#allocation6], 384
    $region25: #{tpu_custom_call.1} parent=1 // pred_fallthru
      _
    %v55 = vld [vmem:[#allocation2] sm:$0xff]
    %v56 = vld [vmem:[#allocation5] sm:$0xf]
    %v57 = vld [vmem:[#allocation5 + $0x4] sm:$0xf]
    %v58 = vld [vmem:[#allocation5 + $0x8] sm:$0xf]
    %v59 = vld [vmem:[#allocation5 + $0xc] sm:$0xf]
    %v60 = vld [vmem:[#allocation5 + $0x10] sm:$0xf]
    %v61 = vld [vmem:[#allocation5 + $0x14] sm:$0xf]
    %v62 = vld [vmem:[#allocation5 + $0x18] sm:$0xf]
    %v63 = vld [vmem:[#allocation5 + $0x1c] sm:$0xf]
    %v64 = vld [vmem:[#allocation5 + $0x20] sm:$0xf]
    %v65 = vld [vmem:[#allocation5 + $0x24] sm:$0xf]
    %v66 = vld [vmem:[#allocation5 + $0x28] sm:$0xf]
    %v67 = vld [vmem:[#allocation5 + $0x2c] sm:$0xf]
    %v68 = vld [vmem:[#allocation5 + $0x30] sm:$0xf]
    %v69 = vld [vmem:[#allocation5 + $0x34] sm:$0xf]
    %v70 = vld [vmem:[#allocation5 + $0x38] sm:$0xf]
    %v71 = vld [vmem:[#allocation5 + $0x3c] sm:$0xf]
    %v72 = vld [vmem:[#allocation7] sm:$0x1]
    %v73 = vpack.c.bf16 %v55, %v55
    %v74 = vlaneseq
    %v75 = vshrl.u32 %v74, 7
    %v76 = vsub.s32 0, %v75
    %v77 = vrot.slane %v72, %v76
    %v94 = vunpack.c.l.b16 %v56
    %v95 = vunpack.c.l.b16 %v57
    %v96 = vunpack.c.l.b16 %v58
    %v97 = vunpack.c.l.b16 %v59
    %v98 = vunpack.c.l.b16 %v60
    %v99 = vunpack.c.l.b16 %v61
    %v100 = vunpack.c.l.b16 %v62
    %v101 = vunpack.c.l.b16 %v63
    %v102 = vunpack.c.l.b16 %v64
    %v103 = vunpack.c.l.b16 %v65
    %v104 = vunpack.c.l.b16 %v66
    %v105 = vunpack.c.l.b16 %v67
    %v106 = vunpack.c.l.b16 %v68
    %v107 = vunpack.c.l.b16 %v69
    %v108 = vunpack.c.l.b16 %v70
    %v109 = vunpack.c.l.b16 %v71
    %v110 = vpack.c.b16 %v95, %v94
    %v111 = vpack.c.b16 %v97, %v96
    %v112 = vpack.c.b16 %v99, %v98
    %v113 = vpack.c.b16 %v101, %v100
    %v114 = vpack.c.b16 %v103, %v102
    %v115 = vpack.c.b16 %v105, %v104
    %v116 = vpack.c.b16 %v107, %v106
    %v117 = vpack.c.b16 %v109, %v108
    %126 = vmatprep.subr.bf16.mxu0 0
    %127 = vmatpush1.bf16.msra.mxu0 %v110
    %128 = vmatprep.subr.bf16.mxu0 0
    %129 = vmatpush1.bf16.msra.mxu0 %v111
    %130 = vmatprep.subr.bf16.mxu0 0
    %131 = vmatpush1.bf16.msra.mxu0 %v112
    %132 = vmatprep.subr.bf16.mxu0 0
    %133 = vmatpush1.bf16.msra.mxu0 %v113
    %134 = vmatprep.subr.bf16.mxu0 0
    %135 = vmatpush1.bf16.msra.mxu0 %v114
    %136 = vmatprep.subr.bf16.mxu0 0
    %137 = vmatpush1.bf16.msra.mxu0 %v115
    %138 = vmatprep.subr.bf16.mxu0 0
    %139 = vmatpush1.bf16.msra.mxu0 %v116
    %140 = vmatprep.subr.bf16.mxu0 0
    %141 = vmatpush1.bf16.msra.mxu0 %v117
    %142 = vmatprep.subr.bf16.mxu0 0
    %143 = vmatpush1.bf16.msra.mxu0 0
    %144 = vmatprep.subr.bf16.mxu0 0
    %145 = vmatpush1.bf16.msra.mxu0 0
    %146 = vmatprep.subr.bf16.mxu0 0
    %147 = vmatpush1.bf16.msra.mxu0 0
    %148 = vmatprep.subr.bf16.mxu0 0
    %149 = vmatpush1.bf16.msra.mxu0 0
    %150 = vmatprep.subr.bf16.mxu0 0
    %151 = vmatpush1.bf16.msra.mxu0 0
    %152 = vmatprep.subr.bf16.mxu0 0
    %153 = vmatpush1.bf16.msra.mxu0 0
    %154 = vmatprep.subr.bf16.mxu0 0
    %155 = vmatpush1.bf16.msra.mxu0 0
    %156 = vmatprep.subr.bf16.mxu0 0
    %157 = vmatpush1.bf16.msra.mxu0 0
    %158 = vmatprep.mubr.bf16.mxu0 0
    %159 = vmatmul.mubr.bf16.gmra.mrb[0].mxu0 %v73
    %v160 = vpop.f32.mrb[0].mxu0
    %v161 = vadd.f32 %v77, %v160
    %v162 = vpop.f32.mrb[0].mxu0
    %v163 = vpop.f32.mrb[0].mxu0
    %v164 = vpop.f32.mrb[0].mxu0
    %165 = vdwg.mxu0
    %v166 = vmax.f32 %v161, 0.0
    %v167 = vld [vmem:[#allocation5 + $0x40] sm:$0xf]
    %v168 = vld [vmem:[#allocation5 + $0x44] sm:$0xf]
    %v169 = vld [vmem:[#allocation5 + $0x48] sm:$0xf]
    %v170 = vld [vmem:[#allocation5 + $0x4c] sm:$0xf]
    %v171 = vld [vmem:[#allocation5 + $0x50] sm:$0xf]
    %v172 = vld [vmem:[#allocation5 + $0x54] sm:$0xf]
    %v173 = vld [vmem:[#allocation5 + $0x58] sm:$0xf]
    %v174 = vld [vmem:[#allocation5 + $0x5c] sm:$0xf]
    %v175 = vld [vmem:[#allocation5 + $0x60] sm:$0xf]
    %v176 = vld [vmem:[#allocation5 + $0x64] sm:$0xf]
    %v177 = vld [vmem:[#allocation5 + $0x68] sm:$0xf]
    %v178 = vld [vmem:[#allocation5 + $0x6c] sm:$0xf]
    %v179 = vld [vmem:[#allocation5 + $0x70] sm:$0xf]
    %v180 = vld [vmem:[#allocation5 + $0x74] sm:$0xf]
    %v181 = vld [vmem:[#allocation5 + $0x78] sm:$0xf]
    %v182 = vld [vmem:[#allocation5 + $0x7c] sm:$0xf]
    %v183 = vld [vmem:[#allocation7 + $0x8] sm:$0x1]
    %v184 = vpack.c.bf16 %v166, %v166
    %v185 = vlaneseq
    %v186 = vshrl.u32 %v185, 7
    %v187 = vsub.s32 0, %v186
    %v188 = vrot.slane %v183, %v187
    %v205 = vunpack.c.l.b16 %v167
    %v206 = vunpack.c.l.b16 %v168
    %v207 = vunpack.c.l.b16 %v169
    %v208 = vunpack.c.l.b16 %v170
    %v209 = vunpack.c.l.b16 %v171
    %v210 = vunpack.c.l.b16 %v172
    %v211 = vunpack.c.l.b16 %v173
    %v212 = vunpack.c.l.b16 %v174
    %v213 = vunpack.c.l.b16 %v175
    %v214 = vunpack.c.l.b16 %v176
    %v215 = vunpack.c.l.b16 %v177
    %v216 = vunpack.c.l.b16 %v178
    %v217 = vunpack.c.l.b16 %v179
    %v218 = vunpack.c.l.b16 %v180
    %v219 = vunpack.c.l.b16 %v181
    %v220 = vunpack.c.l.b16 %v182
    %v221 = vpack.c.b16 %v206, %v205
    %v222 = vpack.c.b16 %v208, %v207
    %v223 = vpack.c.b16 %v210, %v209
    %v224 = vpack.c.b16 %v212, %v211
    %v225 = vpack.c.b16 %v214, %v213
    %v226 = vpack.c.b16 %v216, %v215
    %v227 = vpack.c.b16 %v218, %v217
    %v228 = vpack.c.b16 %v220, %v219
    %237 = vmatprep.subr.bf16.mxu0 0
    %238 = vmatpush1.bf16.msra.mxu0 %v221
    %239 = vmatprep.subr.bf16.mxu0 0
    %240 = vmatpush1.bf16.msra.mxu0 %v222
    %241 = vmatprep.subr.bf16.mxu0 0
    %242 = vmatpush1.bf16.msra.mxu0 %v223
    %243 = vmatprep.subr.bf16.mxu0 0
    %244 = vmatpush1.bf16.msra.mxu0 %v224
    %245 = vmatprep.subr.bf16.mxu0 0
    %246 = vmatpush1.bf16.msra.mxu0 %v225
    %247 = vmatprep.subr.bf16.mxu0 0
    %248 = vmatpush1.bf16.msra.mxu0 %v226
    %249 = vmatprep.subr.bf16.mxu0 0
    %250 = vmatpush1.bf16.msra.mxu0 %v227
    %251 = vmatprep.subr.bf16.mxu0 0
    %252 = vmatpush1.bf16.msra.mxu0 %v228
    %253 = vmatprep.subr.bf16.mxu0 0
    %254 = vmatpush1.bf16.msra.mxu0 0
    %255 = vmatprep.subr.bf16.mxu0 0
    %256 = vmatpush1.bf16.msra.mxu0 0
    %257 = vmatprep.subr.bf16.mxu0 0
    %258 = vmatpush1.bf16.msra.mxu0 0
    %259 = vmatprep.subr.bf16.mxu0 0
    %260 = vmatpush1.bf16.msra.mxu0 0
    %261 = vmatprep.subr.bf16.mxu0 0
    %262 = vmatpush1.bf16.msra.mxu0 0
    %263 = vmatprep.subr.bf16.mxu0 0
    %264 = vmatpush1.bf16.msra.mxu0 0
    %265 = vmatprep.subr.bf16.mxu0 0
    %266 = vmatpush1.bf16.msra.mxu0 0
    %267 = vmatprep.subr.bf16.mxu0 0
    %268 = vmatpush1.bf16.msra.mxu0 0
    %269 = vmatprep.mubr.bf16.mxu0 0
    %270 = vmatmul.mubr.bf16.gmra.mrb[0].mxu0 %v184
    %v271 = vpop.f32.mrb[0].mxu0
    %v272 = vadd.f32 %v188, %v271
    %v273 = vpop.f32.mrb[0].mxu0
    %v274 = vpop.f32.mrb[0].mxu0
    %v275 = vpop.f32.mrb[0].mxu0
    %276 = vdwg.mxu0
    %v277 = vmax.f32 %v272, 0.0
    %v278 = vld [vmem:[#allocation5 + $0x80] sm:$0xf]
    %v279 = vld [vmem:[#allocation5 + $0x84] sm:$0xf]
    %v280 = vld [vmem:[#allocation5 + $0x88] sm:$0xf]
    %v281 = vld [vmem:[#allocation5 + $0x8c] sm:$0xf]
    %v282 = vld [vmem:[#allocation5 + $0x90] sm:$0xf]
    %v283 = vld [vmem:[#allocation5 + $0x94] sm:$0xf]
    %v284 = vld [vmem:[#allocation5 + $0x98] sm:$0xf]
    %v285 = vld [vmem:[#allocation5 + $0x9c] sm:$0xf]
    %v286 = vld [vmem:[#allocation5 + $0xa0] sm:$0xf]
    %v287 = vld [vmem:[#allocation5 + $0xa4] sm:$0xf]
    %v288 = vld [vmem:[#allocation5 + $0xa8] sm:$0xf]
    %v289 = vld [vmem:[#allocation5 + $0xac] sm:$0xf]
    %v290 = vld [vmem:[#allocation5 + $0xb0] sm:$0xf]
    %v291 = vld [vmem:[#allocation5 + $0xb4] sm:$0xf]
    %v292 = vld [vmem:[#allocation5 + $0xb8] sm:$0xf]
    %v293 = vld [vmem:[#allocation5 + $0xbc] sm:$0xf]
    %v294 = vld [vmem:[#allocation7 + $0x10] sm:$0x1]
    %v295 = vpack.c.bf16 %v277, %v277
    %v296 = vlaneseq
    %v297 = vshrl.u32 %v296, 7
    %v298 = vsub.s32 0, %v297
    %v299 = vrot.slane %v294, %v298
    %v316 = vunpack.c.l.b16 %v278
    %v317 = vunpack.c.l.b16 %v279
    %v318 = vunpack.c.l.b16 %v280
    %v319 = vunpack.c.l.b16 %v281
    %v320 = vunpack.c.l.b16 %v282
    %v321 = vunpack.c.l.b16 %v283
    %v322 = vunpack.c.l.b16 %v284
    %v323 = vunpack.c.l.b16 %v285
    %v324 = vunpack.c.l.b16 %v286
    %v325 = vunpack.c.l.b16 %v287
    %v326 = vunpack.c.l.b16 %v288
    %v327 = vunpack.c.l.b16 %v289
    %v328 = vunpack.c.l.b16 %v290
    %v329 = vunpack.c.l.b16 %v291
    %v330 = vunpack.c.l.b16 %v292
    %v331 = vunpack.c.l.b16 %v293
    %v332 = vpack.c.b16 %v317, %v316
    %v333 = vpack.c.b16 %v319, %v318
    %v334 = vpack.c.b16 %v321, %v320
    %v335 = vpack.c.b16 %v323, %v322
    %v336 = vpack.c.b16 %v325, %v324
    %v337 = vpack.c.b16 %v327, %v326
    %v338 = vpack.c.b16 %v329, %v328
    %v339 = vpack.c.b16 %v331, %v330
    %348 = vmatprep.subr.bf16.mxu0 0
    %349 = vmatpush1.bf16.msra.mxu0 %v332
    %350 = vmatprep.subr.bf16.mxu0 0
    %351 = vmatpush1.bf16.msra.mxu0 %v333
    %352 = vmatprep.subr.bf16.mxu0 0
    %353 = vmatpush1.bf16.msra.mxu0 %v334
    %354 = vmatprep.subr.bf16.mxu0 0
    %355 = vmatpush1.bf16.msra.mxu0 %v335
    %356 = vmatprep.subr.bf16.mxu0 0
    %357 = vmatpush1.bf16.msra.mxu0 %v336
    %358 = vmatprep.subr.bf16.mxu0 0
    %359 = vmatpush1.bf16.msra.mxu0 %v337
    %360 = vmatprep.subr.bf16.mxu0 0
    %361 = vmatpush1.bf16.msra.mxu0 %v338
    %362 = vmatprep.subr.bf16.mxu0 0
    %363 = vmatpush1.bf16.msra.mxu0 %v339
    %364 = vmatprep.subr.bf16.mxu0 0
    %365 = vmatpush1.bf16.msra.mxu0 0
    %366 = vmatprep.subr.bf16.mxu0 0
    %367 = vmatpush1.bf16.msra.mxu0 0
    %368 = vmatprep.subr.bf16.mxu0 0
    %369 = vmatpush1.bf16.msra.mxu0 0
    %370 = vmatprep.subr.bf16.mxu0 0
    %371 = vmatpush1.bf16.msra.mxu0 0
    %372 = vmatprep.subr.bf16.mxu0 0
    %373 = vmatpush1.bf16.msra.mxu0 0
    %374 = vmatprep.subr.bf16.mxu0 0
    %375 = vmatpush1.bf16.msra.mxu0 0
    %376 = vmatprep.subr.bf16.mxu0 0
    %377 = vmatpush1.bf16.msra.mxu0 0
    %378 = vmatprep.subr.bf16.mxu0 0
    %379 = vmatpush1.bf16.msra.mxu0 0
    %380 = vmatprep.mubr.bf16.mxu0 0
    %381 = vmatmul.mubr.bf16.gmra.mrb[0].mxu0 %v295
    %v382 = vpop.f32.mrb[0].mxu0
    %v383 = vadd.f32 %v299, %v382
    %v384 = vpop.f32.mrb[0].mxu0
    %v385 = vpop.f32.mrb[0].mxu0
    %v386 = vpop.f32.mrb[0].mxu0
    %387 = vdwg.mxu0
    %v388 = vtanh.pop %v383
    %389 = vst [vmem:[#allocation8] sm:$0xff] %v388
    // Predicated region
    $region26: #{tpu_custom_call.1} parent=1 // pred_check
      _
    $region27: #{tpu_custom_call.1} parent=1 // pred_check_branch
      %391 = sbr.rel (0) target = $region29
    $region28: #{tpu_custom_call.1} parent=1 // pred_region
      %s393 = ssub.s32 128, 128
      %394 = vsyncadd [#allocation4], %s393
      %s396 = sshll.u32 [#allocation8], 4
      %s397 = int_to_ptr.vmem [resolvable:$true] %s396
      %399 = dma.vmem_to_hbm [thread:$0]  %s397, 128, %s3, [#allocation4]
    $region29: #{tpu_custom_call.1} parent=1 // pred_fallthru
      _
    // Predicated region
    $region30: #{tpu_custom_call.1} parent=1 // pred_check
      _
    $region31: #{tpu_custom_call.1} parent=1 // pred_check_branch
      %401 = sbr.rel (0) target = $region33
    $region32: #{tpu_custom_call.1} parent=1 // pred_region
      %402 = dma.done [#allocation4], 128
    $region33: #{tpu_custom_call.1} parent=1 // pred_fallthru
      _
    %403 = vsyncpa [#allocation3], 1
    %404 = vsyncpa [#allocation6], 1
    %405 = vsyncpa [#allocation4], 1

</llo_original>
